<compile_context>
chip_gen: v7x
topology: tpu7x:2x2x1
jax: 0.10.0
libtpu: 0.0.40
codegen_flags: <defaults>
</compile_context>

<pallas_src>
import functools

import jax
import jax.numpy as jnp
from jax.experimental import pallas as pl
from jax.experimental.pallas import tpu as pltpu

_KSIZE = 4          # conv kernel size (fixed by the module)
_WTILE = 16         # output-width padding unit (bf16 sublane tile -> free flattens)
_NEG_SLOPE = 0.2


def _round_up(x, m):
    return (x + m - 1) // m * m


@functools.lru_cache(maxsize=1)
def _single_buffering_supported():
    """Probe once whether pipeline_mode=pl.Buffered(1) compiles & is correct."""
    try:
        def _k(x_ref, o_ref):
            o_ref[...] = x_ref[...] * 2.0

        x = jnp.arange(16 * 128, dtype=jnp.float32).reshape(16, 128)
        y = pl.pallas_call(
            _k,
            out_shape=jax.ShapeDtypeStruct((16, 128), jnp.float32),
            grid=(2,),
            in_specs=[pl.BlockSpec((8, 128), lambda i: (i, 0),
                                   pipeline_mode=pl.Buffered(1))],
            out_specs=pl.BlockSpec((8, 128), lambda i: (i, 0)),
        )(x)
        return bool(jnp.allclose(jax.block_until_ready(y), x * 2.0))
    except Exception:
        return False


def _vmem_cap_bytes():
    try:
        return int(pltpu.get_tpu_info().vmem_capacity_bytes)
    except Exception:
        return 64 << 20            # conservative fallback (v7x per-TC VMEM)


def _padded_vmem_bytes(shape, dtype):
    """Rough VMEM footprint of one buffer (lane/sublane padded)."""
    itemsize = jnp.dtype(dtype).itemsize
    pack = max(1, 4 // itemsize)
    lead = 1
    for d in shape[:-2]:
        lead *= int(d)
    sub = _round_up(int(shape[-2]), 8 * pack)
    lane = _round_up(int(shape[-1]), 128)
    return lead * sub * lane * itemsize


# ----------------------------------------------------------------------------
# Pallas kernel: fused conv(k=4, pad=1, stride s) + bias + LeakyReLU(0.2)
# ----------------------------------------------------------------------------
def _conv_block_kernel(x_ref, w_ref, b_ref, o_ref, *, th, wop, descs,
                       apply_act, slope):
    """One (batch, row-tile) grid step.

    x_ref: (1, HX, PH, WX, K) bf16, layer-specific packed layout (see wrapper)
    w_ref: (T, K, Coutp) bf16 weight slabs, one per (dh, ph, dw) descriptor
    b_ref: (1, Coutp) f32
    o_ref: (1, th, wop, Coutp)
    """
    coutp = o_ref.shape[-1]
    k_dim = x_ref.shape[-1]
    m = th * wop

    row0 = pl.program_id(1) * th
    if th % 8 == 0:
        row0 = pl.multiple_of(row0, 8)

    bias = b_ref[...]                  # hoisted out of the slab loop

    acc = None
    for t, (dh, ph, dw) in enumerate(descs):        # static unroll, <= 8 slabs
        xs = x_ref[0, pl.ds(row0 + dh, th), ph, pl.ds(dw, wop), :]
        part = jnp.dot(xs.reshape(m, k_dim), w_ref[t],
                       preferred_element_type=jnp.float32)
        acc = part if acc is None else acc + part   # chained f32 accumulation

    acc = acc + bias
    if apply_act:
        acc = jnp.where(acc >= 0.0, acc, slope * acc)
    o_ref[...] = acc.reshape(1, th, wop, coutp).astype(o_ref.dtype)


def conv_layer_pallas(x_nhwc, layer, *, out_dtype):
    """One discriminator layer: SN-Conv2d(k=4, pad=1) [+ LeakyReLU(0.2)]."""
    k, s = layer["k"], layer["stride"]
    mode, g_fold = layer["mode"], layer["G"]
    wg, b_row = layer["w_grouped"], layer["b_row"]
    N, H, W, C = x_nhwc.shape
    KQ = k // s
    Ho = (H + 2 - k) // s + 1
    Wo = (W + 2 - k) // s + 1
    T, K, Coutp = wg.shape

    # Row-fold tiling: M = th * Wop per dot; f32 acc capped at ~128 KB.
    Wop = _round_up(Wo, _WTILE)
    m_target = min(max((128 * 1024) // (4 * Coutp), 64), 256)
    th = max(1, min(m_target // Wop, Ho))
    nt = -(-Ho // th)
    Hop = nt * th

    xb = x_nhwc.astype(jnp.bfloat16)
    if mode == "im2col":
        # Tiny-Cin layer: full im2col, K = k*k*Cin, single weight slab.
        Hp = s * (Hop - 1) + k
        Wp = s * (Wop - 1) + k
        xp = jnp.pad(xb, ((0, 0), (1, Hp - H - 1), (1, Wp - W - 1), (0, 0)))
        cols = [xp[:, kh:kh + s * Hop:s, kw:kw + s * Wop:s, :]
                for kh in range(k) for kw in range(k)]
        x_lay = jnp.concatenate(cols, axis=-1).reshape(N, Hop, 1, Wop, k * k * C)
        HX, PH, WX = Hop, 1, Wop
        descs = ((0, 0, 0),)
    else:
        # Stride-phase layout with g_fold kernel-w phases folded into lanes:
        #   x_lay[n, ih, ph, jw, (g*s + pw)*C + c] = x_pad[n, s*ih+ph, s*(jw+g)+pw, c]
        HX = Hop + KQ - 1
        Ws2 = Wop + KQ - 1
        Hp, Wp = HX * s, Ws2 * s
        xp = jnp.pad(xb, ((0, 0), (1, Hp - H - 1), (1, Wp - W - 1), (0, 0)))
        x3 = xp.reshape(N, HX, s, Ws2, s * C)           # free reshape
        WX = Wop + KQ - g_fold
        if g_fold == 1:
            x_lay = x3
        else:
            x_lay = jnp.concatenate(
                [x3[:, :, :, g:g + WX, :] for g in range(g_fold)], axis=-1)
        PH = s
        descs = tuple((qh, ph, qg * g_fold)
                      for qh in range(KQ) for ph in range(s)
                      for qg in range(KQ // g_fold))
    assert len(descs) == T and x_lay.shape[-1] == K, (len(descs), T, x_lay.shape, K)

    kernel = functools.partial(_conv_block_kernel, th=th, wop=Wop, descs=descs,
                               apply_act=layer["apply_act"], slope=_NEG_SLOPE)

    # Constant operands: skip the useless second pipeline buffer when possible.
    const_kw = {}
    if _single_buffering_supported():
        const_kw = dict(pipeline_mode=pl.Buffered(1))
    w_spec = pl.BlockSpec((T, K, Coutp), lambda n, t: (0, 0, 0), **const_kw)
    b_spec = pl.BlockSpec((1, Coutp), lambda n, t: (0, 0), **const_kw)

    # Explicit VMEM budget with headroom, clamped to the chip's capacity.
    n_wbuf = 1 if const_kw else 2
    need = (2 * _padded_vmem_bytes((1, HX, PH, WX, K), jnp.bfloat16)
            + 2 * _padded_vmem_bytes((1, th, Wop, Coutp), out_dtype)
            + n_wbuf * _padded_vmem_bytes((T, K, Coutp), jnp.bfloat16)
            + n_wbuf * _padded_vmem_bytes((1, Coutp), jnp.float32))
    vmem_limit = int(min(max(int(need * 1.5), 32 << 20),
                         int(0.7 * _vmem_cap_bytes())))

    out = pl.pallas_call(
        kernel,
        out_shape=jax.ShapeDtypeStruct((N, Hop, Wop, Coutp), out_dtype),
        grid=(N, nt),
        in_specs=[
            pl.BlockSpec((1, HX, PH, WX, K), lambda n, t: (n, 0, 0, 0, 0)),
            w_spec,
            b_spec,
        ],
        out_specs=pl.BlockSpec((1, th, Wop, Coutp), lambda n, t: (n, t, 0, 0)),
        compiler_params=pltpu.CompilerParams(
            dimension_semantics=("parallel", "parallel"),
            vmem_limit_bytes=vmem_limit),
    )(x_lay, wg, b_row)

    # Drop the W/Cout padding (garbage columns / zero channels).
    return out[:, :Ho, :Wo, :layer["cout"]]


def nlayer_discriminator_forward(x_nchw, params):
    y = jnp.transpose(x_nchw, (0, 2, 3, 1))              # NCHW -> NHWC
    for i, layer in enumerate(params):
        last = i == len(params) - 1
        y = conv_layer_pallas(
            y, layer, out_dtype=jnp.float32 if last else jnp.bfloat16)
        # Dropout2d: identity (eval mode)
    return jnp.transpose(y, (0, 3, 1, 2))                # NHWC -> NCHW


# ----------------------------------------------------------------------------
# Parameter preprocessing (hoisted out of the forward path)
# ----------------------------------------------------------------------------
def spectral_normalize(w_oihw, key, n_iter=1, eps=1e-12):
    """PyTorch-style spectral norm: W / sigma, one power iteration."""
    O = w_oihw.shape[0]
    w_mat = w_oihw.reshape(O, -1)
    u = jax.random.normal(key, (O,), jnp.float32)
    u = u / (jnp.linalg.norm(u) + eps)
    v = None
    for _ in range(n_iter):
        v = w_mat.T @ u
        v = v / (jnp.linalg.norm(v) + eps)
        u = w_mat @ v
        u = u / (jnp.linalg.norm(u) + eps)
    sigma = u @ (w_mat @ v)
    return w_oihw / sigma


def _group_weights_phase(w_oihw, s, g_fold, k=_KSIZE):
    """OIHW -> (T, g_fold*s*Cin, Coutp) slabs matching the phase layout."""
    KQ = k // s
    coutp, cin = w_oihw.shape[0], w_oihw.shape[1]
    w1 = jnp.transpose(w_oihw, (2, 3, 1, 0))              # (kh, kw, cin, cout)
    g = w1.reshape(KQ, s, KQ // g_fold, g_fold, s, cin, coutp)
    g = g.reshape(KQ * s * (KQ // g_fold), g_fold * s * cin, coutp)
    return g.astype(jnp.bfloat16)


def _group_weights_im2col(w_oihw, k=_KSIZE):
    coutp, cin = w_oihw.shape[0], w_oihw.shape[1]
    w1 = jnp.transpose(w_oihw, (2, 3, 1, 0))              # (kh, kw, cin, cout)
    return w1.reshape(1, k * k * cin, coutp).astype(jnp.bfloat16)


def build_params(key, input_nc=6, ndf=32, n_layers=3):
    # (in_c, out_c, stride, apply_act), matching NLayerDiscriminator.__init__
    cfg = [(input_nc, ndf, 2, True)]
    nf_mult = 1
    for n in range(1, n_layers + 1):
        nf_mult_prev = nf_mult
        nf_mult = min(2 ** n, 8)
        stride = 2 if n <= 2 else 1
        cfg.append((ndf * nf_mult_prev, ndf * nf_mult, stride, True))
    cfg.append((ndf * nf_mult, 1, 1, False))

    params = []
    for i, (cin, cout, stride, act) in enumerate(cfg):
        kw_, kb_, ku_ = jax.random.split(jax.random.fold_in(key, i), 3)
        fan_in = cin * _KSIZE * _KSIZE
        w = jax.random.normal(kw_, (cout, cin, _KSIZE, _KSIZE), jnp.float32) * \
            jnp.sqrt(2.0 / fan_in)
        b = jax.random.uniform(kb_, (cout,), jnp.float32,
                               -1.0 / jnp.sqrt(fan_in), 1.0 / jnp.sqrt(fan_in))
        w_sn = spectral_normalize(w, ku_, n_iter=1)

        # Pad a tiny Cout (the final 1-channel head) up to a full lane tile so
        # its dot/store are not 1-lane masked ops (padded weights/bias = 0).
        coutp = cout if cout >= 8 else 128
        w_pad = jnp.pad(w_sn, ((0, coutp - cout), (0, 0), (0, 0), (0, 0)))
        b_pad = jnp.pad(b, ((0, coutp - cout),))

        KQ = _KSIZE // stride
        if cin * _KSIZE * _KSIZE <= 256:     # tiny Cin -> full im2col (K=96)
            mode, g_fold = "im2col", 1
            wg = _group_weights_im2col(w_pad)
        else:                                # pair-fold kw phases: K = 2*s*Cin
            mode, g_fold = "phase", min(2, KQ)
            wg = _group_weights_phase(w_pad, stride, g_fold)

        params.append(dict(
            k=_KSIZE, stride=stride, apply_act=act, mode=mode, G=g_fold,
            cout=cout,
            w_grouped=wg,                                     # bf16, kernel-ready
            b_row=b_pad.reshape(1, coutp).astype(jnp.float32),
            w_oihw=w_sn, b_vec=b))                            # f32, for reference
    return params


# ----------------------------------------------------------------------------
# Pure-JAX reference mirroring the kernel's bf16-input / f32-accumulate math
# ----------------------------------------------------------------------------
def reference_forward(x_nchw, params):
    y = jnp.transpose(x_nchw, (0, 2, 3, 1)).astype(jnp.float32)
    for layer in params:
        w_hwio = jnp.transpose(layer["w_oihw"], (2, 3, 1, 0)).astype(jnp.bfloat16)
        y = jax.lax.conv_general_dilated(
            y.astype(jnp.bfloat16), w_hwio,
            (layer["stride"], layer["stride"]), ((1, 1), (1, 1)),
            dimension_numbers=("NHWC", "HWIO", "NHWC"),
            preferred_element_type=jnp.float32)
        y = y + layer["b_vec"]
        if layer["apply_act"]:
            y = jnp.where(y >= 0.0, y, _NEG_SLOPE * y)
    return jnp.transpose(y, (0, 3, 1, 2))


# ----------------------------------------------------------------------------
if __name__ == "__main__":
    key = jax.random.PRNGKey(0)
    kx, kp = jax.random.split(key)

    # Input: NCHW, batch=2, input_nc=6, spatial=32 (smallest size for which
    # all five 4x4 convs are valid: 32 -> 16 -> 8 -> 4 -> 3 -> 2).
    x = jax.random.normal(kx, (2, 6, 32, 32), jnp.float32)
    params = build_params(kp, input_nc=6, ndf=32, n_layers=3)

    out = jax.block_until_ready(nlayer_discriminator_forward(x, params))
    ref = jax.block_until_ready(reference_forward(x, params))

    assert out.shape == (2, 1, 2, 2), out.shape
    max_err = float(jnp.max(jnp.abs(out - ref)))
    assert jnp.allclose(out, ref, atol=1e-2, rtol=1e-2), max_err

    print("KERNEL_OK")
</pallas_src>

<mosaic_0001>
module attributes {stable_mosaic.version = 11 : i64} {
  func.func @_k(%arg0: i32, %arg1: memref<8x128xf32, #tpu.memory_space<vmem>>, %arg2: memref<8x128xf32, #tpu.memory_space<vmem>>) attributes {dimension_semantics = [#tpu.dimension_semantics<arbitrary>], iteration_bounds = array<i64: 2>, scalar_prefetch = 0 : i64, scratch_operands = 0 : i64, tpu.core_type = #tpu.core_type<tc>, window_params = [{pipeline_mode = #tpu.pipeline_mode<synchronous>, transform_indices = @transform_0, window_bounds = array<i64: 8, 128>}, {transform_indices = @transform_1, window_bounds = array<i64: 8, 128>}]} {
    %c0 = arith.constant 0 : index
    %c0_0 = arith.constant 0 : index
    %0 = vector.load %arg1[%c0, %c0_0] : memref<8x128xf32, #tpu.memory_space<vmem>>, vector<8x128xf32>
    %cst = arith.constant 2.000000e+00 : f32
    %1 = vector.broadcast %cst : f32 to vector<8x128xf32>
    %2 = arith.mulf %0, %1 : vector<8x128xf32>
    %c0_1 = arith.constant 0 : index
    %c0_2 = arith.constant 0 : index
    %3 = vector.load %arg2[%c0_1, %c0_2] : memref<8x128xf32, #tpu.memory_space<vmem>>, vector<8x128xf32>
    tpu.vector_store %arg2[%c0_1, %c0_2], %2 {strides = array<i32>} : memref<8x128xf32, #tpu.memory_space<vmem>>, vector<8x128xf32>,
    return
  }
  func.func @transform_0(%arg0: i32) -> (i32, i32) {
    %c0_i32 = arith.constant 0 : i32
    %c0_i32_0 = arith.constant 0 : i32
    return %arg0, %c0_i32 : i32, i32
  }
  func.func @transform_1(%arg0: i32) -> (i32, i32) {
    %c0_i32 = arith.constant 0 : i32
    %c0_i32_0 = arith.constant 0 : i32
    return %arg0, %c0_i32 : i32, i32
  }
}

module attributes {stable_mosaic.version = 11 : i64} {
  func.func @_conv_block_kernel(%arg0: i32, %arg1: i32, %arg2: memref<1x16x1x16x96xbf16, #tpu.memory_space<vmem>>, %arg3: memref<1x96x32xbf16, #tpu.memory_space<vmem>>, %arg4: memref<1x32xf32, #tpu.memory_space<vmem>>, %arg5: memref<1x16x16x32xbf16, #tpu.memory_space<vmem>>) attributes {dimension_semantics = [#tpu.dimension_semantics<parallel>, #tpu.dimension_semantics<parallel>], iteration_bounds = array<i64: 2, 1>, scalar_prefetch = 0 : i64, scratch_operands = 0 : i64, tpu.core_type = #tpu.core_type<tc>, window_params = [{transform_indices = @transform_0, window_bounds = array<i64: 1, 16, 1, 16, 96>}, {pipeline_mode = #tpu.pipeline_mode<synchronous>, transform_indices = @transform_1, window_bounds = array<i64: 1, 96, 32>}, {pipeline_mode = #tpu.pipeline_mode<synchronous>, transform_indices = @transform_2, window_bounds = array<i64: 1, 32>}, {transform_indices = @transform_3, window_bounds = array<i64: 1, 16, 16, 32>}]} {
    %c16_i32 = arith.constant 16 : i32
    %0 = arith.muli %arg1, %c16_i32 : i32
    %1 = tpu.assume_multiple %0, 8 : i32
    %c0 = arith.constant 0 : index
    %c0_0 = arith.constant 0 : index
    %2 = vector.load %arg4[%c0, %c0_0] : memref<1x32xf32, #tpu.memory_space<vmem>>, vector<1x32xf32>
    %c0_i32 = arith.constant 0 : i32
    %3 = arith.addi %1, %c0_i32 : i32
    %c0_1 = arith.constant 0 : index
    %4 = arith.index_cast %3 : i32 to index
    %c0_2 = arith.constant 0 : index
    %c0_3 = arith.constant 0 : index
    %c0_4 = arith.constant 0 : index
    %5 = vector.load %arg2[%c0_1, %4, %c0_2, %c0_3, %c0_4] : memref<1x16x1x16x96xbf16, #tpu.memory_space<vmem>>, vector<1x16x1x16x96xbf16>
    %6 = vector.shape_cast %5 : vector<1x16x1x16x96xbf16> to vector<16x16x96xbf16>
    %7 = vector.shape_cast %6 : vector<16x16x96xbf16> to vector<256x96xbf16>
    %c0_5 = arith.constant 0 : index
    %c0_6 = arith.constant 0 : index
    %c0_7 = arith.constant 0 : index
    %8 = vector.load %arg3[%c0_5, %c0_6, %c0_7] : memref<1x96x32xbf16, #tpu.memory_space<vmem>>, vector<1x96x32xbf16>
    %9 = vector.shape_cast %8 : vector<1x96x32xbf16> to vector<96x32xbf16>
    %cst = arith.constant dense<0.000000e+00> : vector<256x32xf32>
    %10 = tpu.matmul %7, %9, %cst {dimension_numbers = #tpu.dot_dimension_numbers<[1], [0], [0], [1], [0, 0, 1, 1], [], []>} : vector<256x96xbf16>, vector<96x32xbf16>, vector<256x32xf32> -> vector<256x32xf32>
    %11 = vector.broadcast %2 : vector<1x32xf32> to vector<256x32xf32>
    %12 = arith.addf %10, %11 : vector<256x32xf32>
    %cst_8 = arith.constant 0.000000e+00 : f32
    %13 = vector.broadcast %cst_8 : f32 to vector<256x32xf32>
    %14 = arith.cmpf oge, %12, %13 : vector<256x32xf32>
    %cst_9 = arith.constant 2.000000e-01 : f32
    %15 = vector.broadcast %cst_9 : f32 to vector<256x32xf32>
    %16 = arith.mulf %15, %12 : vector<256x32xf32>
    %17 = arith.select %14, %12, %16 : vector<256x32xi1>, vector<256x32xf32>
    %18 = vector.shape_cast %17 : vector<256x32xf32> to vector<1x16x16x32xf32>
    %19 = arith.truncf %18 : vector<1x16x16x32xf32> to vector<1x16x16x32xbf16>
    %c0_10 = arith.constant 0 : index
    %c0_11 = arith.constant 0 : index
    %c0_12 = arith.constant 0 : index
    %c0_13 = arith.constant 0 : index
    %20 = vector.load %arg5[%c0_10, %c0_11, %c0_12, %c0_13] : memref<1x16x16x32xbf16, #tpu.memory_space<vmem>>, vector<1x16x16x32xbf16>
    tpu.vector_store %arg5[%c0_10, %c0_11, %c0_12, %c0_13], %19 {strides = array<i32>} : memref<1x16x16x32xbf16, #tpu.memory_space<vmem>>, vector<1x16x16x32xbf16>,
    return
  }
  func.func @transform_0(%arg0: i32, %arg1: i32) -> (i32, i32, i32, i32, i32) {
    %c0_i32 = arith.constant 0 : i32
    %c0_i32_0 = arith.constant 0 : i32
    %c0_i32_1 = arith.constant 0 : i32
    %c0_i32_2 = arith.constant 0 : i32
    %c0_i32_3 = arith.constant 0 : i32
    return %arg0, %c0_i32, %c0_i32_0, %c0_i32_1, %c0_i32_2 : i32, i32, i32, i32, i32
  }
  func.func @transform_1(%arg0: i32, %arg1: i32) -> (i32, i32, i32) {
    %c0_i32 = arith.constant 0 : i32
    %c0_i32_0 = arith.constant 0 : i32
    %c0_i32_1 = arith.constant 0 : i32
    %c0_i32_2 = arith.constant 0 : i32
    return %c0_i32, %c0_i32_0, %c0_i32_1 : i32, i32, i32
  }
  func.func @transform_2(%arg0: i32, %arg1: i32) -> (i32, i32) {
    %c0_i32 = arith.constant 0 : i32
    %c0_i32_0 = arith.constant 0 : i32
    %c0_i32_1 = arith.constant 0 : i32
    return %c0_i32, %c0_i32_0 : i32, i32
  }
  func.func @transform_3(%arg0: i32, %arg1: i32) -> (i32, i32, i32, i32) {
    %c0_i32 = arith.constant 0 : i32
    %c0_i32_0 = arith.constant 0 : i32
    %c0_i32_1 = arith.constant 0 : i32
    return %arg0, %arg1, %c0_i32, %c0_i32_0 : i32, i32, i32, i32
  }
}

</mosaic_0001>

<llo_original>
// kernel: tpu_custom_call.1
$region0: #{tpu_custom_call.1}
  #allocation0 [shape = 'u32[]', space=smem, size = 0x4, offset = 0x4, fixed_abs, tag = 'smem constant byte address 0x4 - core index']
  #allocation1 [shape = 'u32[144,128]{1,0:T(1,128)}', space=vmem, size = 0x12000, scoped, tag = 'internal scratch']
  %s0 = inlined_call_operand.hbm [shape: f32[16,128], index: 0, kind: input, shape index: {}]
  %s1 = inlined_call_operand.hbm [shape: f32[16,128], index: 1, kind: output, shape index: {}]
  %s2 = sld [smem:[#allocation0]]
  $region41: #{tpu_custom_call.1} parent=0
    _
  %s4 = ssub.s32 1, %s2
  %s5 = scalar_select 0, %s4, %s2
  $region1: #{tpu_custom_call.1} parent=0
    #allocation2 [shape = 'u8[4096]{0}', space=vmem, size = 0x1000, scoped, tag = 'input window, operand 0, single buffered']
    #allocation3 [shape = 's32[2]{0}', space=sflag, size = 0x8, scoped, tag = 'scoped memory for tpu_custom_call.1']
    #allocation4 [shape = 's32[2]{0}', space=sflag, size = 0x8, scoped, tag = 'scoped memory for tpu_custom_call.1']
    #allocation5 [shape = 'u8[8192]{0}', space=vmem, size = 0x2000, scoped, tag = 'output window, operand 0']
    %6 = vsyncpa [#allocation3], 0
    %7 = vsyncpa [#allocation4], 0
    %s8 = scalar_lea.sflag [#allocation4], 1
    %9 = vsyncpa %s8, 0
    loop: start=0, step=1, limit=4
    $region2: #{tpu_custom_call.1} parent=1 // loop_pre_header
      _
    $region3: #{tpu_custom_call.1} parent=1 // loop_header
      %s11 = sphi 0, %s15
      %p12 = scmp.ge.s32.totalorder %s11, 4
      %s21 = sphi 0, %s23
      %s24 = sphi 0, %s21
      %s25 = sphi 0, %s24
      %s41 = sphi 0, %s25
      %s47 = sphi 0, %s49
      %s50 = sphi 0, %s47
      %s51 = sphi 0, %s50
      %s67 = sphi 0, %s51
    $region4: #{tpu_custom_call.1} parent=1 // loop_header_branch
      %14 = sbr.rel (%p12) target = $region8
    $region5: #{tpu_custom_call.1} parent=1 // loop_body
      %s16 = ssub.s32 %s11, 1
      %s17 = ssub.s32 %s11, 2
      %s18 = sadd.s32 %s11, 1
      %s19 = ssub.s32 %s11, %s18
      %p20 = scmp.eq.s32.totalorder %s19, 0
      %s22 = sadd.s32 %s21, 1
      %s23 = scalar_select %p20, %s21, %s22
      %p26 = pneg %p20
      %p27 = scmp.eq.s32.totalorder %s11, 1
      %p28 = por %p26, %p27
      %p29 = scmp.ne.s32.totalorder %s21, %s24
      %p30 = scmp.eq.s32.totalorder %s11, 0
      %p31 = por %p29, %p30
      %p32 = scmp.ne.s32.totalorder %s21, %s24
      %p33 = scmp.eq.s32.totalorder %s16, 1
      %p34 = por %p32, %p33
      %p35 = scmp.ne.s32.totalorder %s24, %s25
      %p36 = scmp.eq.s32.totalorder %s16, 0
      %p37 = por %p35, %p36
      %p38 = scmp.ne.s32.totalorder %s24, %s25
      %p39 = scmp.eq.s32.totalorder %s17, 1
      %p40 = por %p38, %p39
      %p42 = scmp.ne.s32.totalorder %s25, %s41
      %p43 = scmp.eq.s32.totalorder %s17, 0
      %p44 = por %p42, %p43
      %s45 = ssub.s32 %s11, %s18
      %p46 = scmp.eq.s32.totalorder %s45, 0
      %s48 = sadd.s32 %s47, 1
      %s49 = scalar_select %p46, %s47, %s48
      %p52 = pneg %p46
      %p53 = scmp.eq.s32.totalorder %s11, 1
      %p54 = por %p52, %p53
      %p55 = scmp.ne.s32.totalorder %s47, %s50
      %p56 = scmp.eq.s32.totalorder %s11, 0
      %p57 = por %p55, %p56
      %p58 = scmp.ne.s32.totalorder %s47, %s50
      %p59 = scmp.eq.s32.totalorder %s16, 1
      %p60 = por %p58, %p59
      %p61 = scmp.ne.s32.totalorder %s50, %s51
      %p62 = scmp.eq.s32.totalorder %s16, 0
      %p63 = por %p61, %p62
      %p64 = scmp.ne.s32.totalorder %s50, %s51
      %p65 = scmp.eq.s32.totalorder %s17, 1
      %p66 = por %p64, %p65
      %p68 = scmp.ne.s32.totalorder %s51, %s67
      %p69 = scmp.eq.s32.totalorder %s17, 0
      %p70 = por %p68, %p69
      %p71 = scmp.le.s32.totalorder 1, %s11
      %p72 = scmp.lt.s32.totalorder %s11, 3
      %p73 = pnand %p71, %p72
      %p74 = pneg %p73
      // Predicated region
      $region9: #{tpu_custom_call.1} parent=5 // pred_check
        _
      $region10: #{tpu_custom_call.1} parent=5 // pred_check_branch
        %76 = sbr.rel (%p73) target = $region12
      $region11: #{tpu_custom_call.1} parent=5 // pred_region
        %s77 = ssub.s32 %s11, 1
        // Predicated region
        $region13: #{tpu_custom_call.1} parent=11 // pred_check
          %p78 = pneg %p37
        $region14: #{tpu_custom_call.1} parent=11 // pred_check_branch
          %80 = sbr.rel (%p78) target = $region16
        $region15: #{tpu_custom_call.1} parent=11 // pred_region
          %s82 = ssub.s32 128, 128
          %83 = vsyncadd [#allocation3], %s82
          %s84 = smul.addr %s16, 128
          %s85 = scalar_lea.hbm %s0, %s84
          %s87 = sshll.u32 [#allocation2], 4
          %s88 = int_to_ptr.vmem [resolvable:$true] %s87
          %90 = dma.hbm_to_vmem [thread:$0]  %s85, 128, %s88, [#allocation3]
        $region16: #{tpu_custom_call.1} parent=11 // pred_fallthru
          _
      $region12: #{tpu_custom_call.1} parent=5 // pred_fallthru
        _
      %p91 = scmp.lt.s32.totalorder %s11, 2
      // Predicated region
      $region17: #{tpu_custom_call.1} parent=5 // pred_check
        %p92 = pneg %p91
      $region18: #{tpu_custom_call.1} parent=5 // pred_check_branch
        %94 = sbr.rel (%p92) target = $region20
      $region19: #{tpu_custom_call.1} parent=5 // pred_region
        _
      $region20: #{tpu_custom_call.1} parent=5 // pred_fallthru
        _
      %p95 = scmp.le.s32.totalorder 1, %s11
      %p96 = scmp.lt.s32.totalorder %s11, 3
      %p97 = pnand %p95, %p96
      %p98 = pneg %p97
      // Predicated region
      $region21: #{tpu_custom_call.1} parent=5 // pred_check
        _
      $region22: #{tpu_custom_call.1} parent=5 // pred_check_branch
        %100 = sbr.rel (%p97) target = $region24
      $region23: #{tpu_custom_call.1} parent=5 // pred_region
        %s101 = ssub.s32 %s11, 1
        // Predicated region
        $region25: #{tpu_custom_call.1} parent=23 // pred_check
          %p102 = pneg %p37
        $region26: #{tpu_custom_call.1} parent=23 // pred_check_branch
          %104 = sbr.rel (%p102) target = $region28
        $region27: #{tpu_custom_call.1} parent=23 // pred_region
          %105 = dma.done [#allocation3], 128
        $region28: #{tpu_custom_call.1} parent=23 // pred_fallthru
          _
        %p106 = pneg %p37
        %p107 = pneg %p34
        %p108 = pneg %p63
        %p109 = pneg %p60
        %s110 = sand.u32 %s50, 1
        %s111 = scalar_lea.sflag [#allocation4], %s110
        %s112 = sand.u32 %s50, 1
        %s113 = smul.addr %s112, 8
        %s114 = scalar_lea.vmem [#allocation5], %s113
        %v115 = vld [vmem:[#allocation2] sm:$0xff]
        %v116 = vmul.f32 %v115, 2.0
        %117 = vst [vmem:[%s114] sm:$0xff] %v116
        %s118 = sand.u32 %s50, 1
        %s119 = scalar_lea.sflag [#allocation4], %s118
        %s120 = sand.u32 %s50, 1
        %s121 = smul.addr %s120, 8
        %s122 = scalar_lea.vmem [#allocation5], %s121
        // Predicated region
        $region29: #{tpu_custom_call.1} parent=23 // pred_check
          %p123 = pneg %p60
        $region30: #{tpu_custom_call.1} parent=23 // pred_check_branch
          %125 = sbr.rel (%p123) target = $region32
        $region31: #{tpu_custom_call.1} parent=23 // pred_region
          %s127 = ssub.s32 128, 128
          %128 = vsyncadd %s119, %s127
          %s129 = smul.addr %s16, 128
          %s130 = scalar_lea.hbm %s1, %s129
          %s132 = sshll.u32 %s122, 4
          %s133 = int_to_ptr.vmem [resolvable:$true] %s132
          %135 = dma.vmem_to_hbm [thread:$0]  %s133, 128, %s130, %s119
        $region32: #{tpu_custom_call.1} parent=23 // pred_fallthru
          _
      $region24: #{tpu_custom_call.1} parent=5 // pred_fallthru
        _
      %p136 = scmp.le.s32.totalorder 2, %s11
      // Predicated region
      $region33: #{tpu_custom_call.1} parent=5 // pred_check
        %p137 = pneg %p136
      $region34: #{tpu_custom_call.1} parent=5 // pred_check_branch
        %139 = sbr.rel (%p137) target = $region36
      $region35: #{tpu_custom_call.1} parent=5 // pred_region
        %s140 = ssub.s32 %s11, 2
        // Predicated region
        $region37: #{tpu_custom_call.1} parent=35 // pred_check
          %p141 = pneg %p66
        $region38: #{tpu_custom_call.1} parent=35 // pred_check_branch
          %143 = sbr.rel (%p141) target = $region40
        $region39: #{tpu_custom_call.1} parent=35 // pred_region
          %s144 = sand.u32 %s51, 1
          %s145 = scalar_lea.sflag [#allocation4], %s144
          %s146 = sand.u32 %s51, 1
          %s147 = smul.addr %s146, 8
          %s148 = scalar_lea.vmem [#allocation5], %s147
          %149 = dma.done %s145, 128
        $region40: #{tpu_custom_call.1} parent=35 // pred_fallthru
          _
      $region36: #{tpu_custom_call.1} parent=5 // pred_fallthru
        _
    $region6: #{tpu_custom_call.1} parent=1 // loop_footer
      %s15 = sadd.s32 1, %s11
    $region7: #{tpu_custom_call.1} parent=1 // loop_footer_branch
      %10 = sbr.rel target = $region3
    $region8: #{tpu_custom_call.1} parent=1 // loop_exit
      _
    %150 = vsyncpa [#allocation3], 1
    %s151 = scalar_lea.sflag [#allocation3], 1
    %152 = vsyncpa %s151, 1
    %153 = vsyncpa [#allocation4], 1
    %s154 = scalar_lea.sflag [#allocation4], 1
    %155 = vsyncpa %s154, 1

// kernel: tpu_custom_call.1
$region0: #{tpu_custom_call.1}
  #allocation0 [shape = 'u32[]', space=smem, size = 0x4, offset = 0x4, fixed_abs, tag = 'smem constant byte address 0x4 - core index']
  #allocation1 [shape = 'u32[144,128]{1,0:T(1,128)}', space=vmem, size = 0x12000, scoped, tag = 'internal scratch']
  %s0 = inlined_call_operand.hbm [shape: bf16[2,16,1,16,96], index: 0, kind: input, shape index: {}]
  %s1 = inlined_call_operand.vmem [shape: bf16[1,96,32], index: 1, kind: input, shape index: {}]
  %s2 = inlined_call_operand.vmem [shape: f32[1,32], index: 2, kind: input, shape index: {}]
  %s3 = inlined_call_operand.hbm [shape: bf16[2,16,16,32], index: 3, kind: output, shape index: {}]
  %s4 = sld [smem:[#allocation0]]
  $region49: #{tpu_custom_call.1} parent=0
    _
  %s6 = ssub.s32 1, %s4
  %s7 = scalar_select 0, %s6, %s4
  $region1: #{tpu_custom_call.1} parent=0
    #allocation2 [shape = 'u8[131072]{0}', space=vmem, size = 0x20000, scoped, tag = 'input window, operand 0']
    #allocation3 [shape = 's32[2]{0}', space=sflag, size = 0x8, scoped, tag = 'scoped memory for tpu_custom_call.1']
    #allocation4 [shape = 's32[2]{0}', space=sflag, size = 0x8, scoped, tag = 'scoped memory for tpu_custom_call.1']
    #allocation5 [shape = 'u8[131072]{0}', space=vmem, size = 0x20000, scoped, tag = 'output window, operand 0']
    %8 = vsyncpa [#allocation3], 0
    %s9 = scalar_lea.sflag [#allocation3], 1
    %10 = vsyncpa %s9, 0
    %11 = vsyncpa [#allocation4], 0
    %s12 = scalar_lea.sflag [#allocation4], 1
    %13 = vsyncpa %s12, 0
    loop: start=0, step=1, limit=4
    $region2: #{tpu_custom_call.1} parent=1 // loop_pre_header
      _
    $region3: #{tpu_custom_call.1} parent=1 // loop_header
      %s15 = sphi 0, %s19
      %p16 = scmp.ge.s32.totalorder %s15, 4
      %s22 = sphi 0, %s34
      %s23 = sphi 0, %s30
      %s24 = sphi 0, %s22
      %s25 = sphi 0, %s23
      %s26 = sphi 0, %s24
      %s27 = sphi 0, %s25
      %s37 = sphi 0, %s39
      %s40 = sphi 0, %s37
      %s41 = sphi 0, %s40
      %s57 = sphi 0, %s41
      %s61 = sphi 0, %s61
      %s63 = sphi 0, %s61
      %s64 = sphi 0, %s63
      %s78 = sphi 0, %s64
      %s82 = sphi 0, %s82
      %s84 = sphi 0, %s82
      %s85 = sphi 0, %s84
      %s99 = sphi 0, %s85
      %s107 = sphi 0, %s109
      %s110 = sphi 0, %s107
      %s111 = sphi 0, %s110
      %s127 = sphi 0, %s111
    $region4: #{tpu_custom_call.1} parent=1 // loop_header_branch
      %18 = sbr.rel (%p16) target = $region8
    $region5: #{tpu_custom_call.1} parent=1 // loop_body
      %s20 = ssub.s32 %s15, 1
      %s21 = ssub.s32 %s15, 2
      %s28 = sadd.s32 1, %s23
      %p29 = scmp.ge.s32.totalorder %s28, 1
      %s30 = scalar_select %p29, 0, %s28
      %s31 = sadd.s32 1, %s22
      %s32 = scalar_select %p29, %s31, %s22
      %p33 = scmp.ge.s32.totalorder %s32, 2
      %s34 = scalar_select %p33, 0, %s32
      %s35 = ssub.s32 %s22, %s34
      %p36 = scmp.eq.s32.totalorder %s35, 0
      %s38 = sadd.s32 %s37, 1
      %s39 = scalar_select %p36, %s37, %s38
      %p42 = pneg %p36
      %p43 = scmp.eq.s32.totalorder %s15, 1
      %p44 = por %p42, %p43
      %p45 = scmp.ne.s32.totalorder %s37, %s40
      %p46 = scmp.eq.s32.totalorder %s15, 0
      %p47 = por %p45, %p46
      %p48 = scmp.ne.s32.totalorder %s37, %s40
      %p49 = scmp.eq.s32.totalorder %s20, 1
      %p50 = por %p48, %p49
      %p51 = scmp.ne.s32.totalorder %s40, %s41
      %p52 = scmp.eq.s32.totalorder %s20, 0
      %p53 = por %p51, %p52
      %p54 = scmp.ne.s32.totalorder %s40, %s41
      %p55 = scmp.eq.s32.totalorder %s21, 1
      %p56 = por %p54, %p55
      %p58 = scmp.ne.s32.totalorder %s41, %s57
      %p59 = scmp.eq.s32.totalorder %s21, 0
      %p60 = por %p58, %p59
      %s62 = sadd.s32 %s61, 1
      %p65 = scmp.eq.s32.totalorder %s15, 1
      %p66 = scmp.ne.s32.totalorder %s61, %s63
      %p67 = scmp.eq.s32.totalorder %s15, 0
      %p68 = por %p66, %p67
      %p69 = scmp.ne.s32.totalorder %s61, %s63
      %p70 = scmp.eq.s32.totalorder %s20, 1
      %p71 = por %p69, %p70
      %p72 = scmp.ne.s32.totalorder %s63, %s64
      %p73 = scmp.eq.s32.totalorder %s20, 0
      %p74 = por %p72, %p73
      %p75 = scmp.ne.s32.totalorder %s63, %s64
      %p76 = scmp.eq.s32.totalorder %s21, 1
      %p77 = por %p75, %p76
      %p79 = scmp.ne.s32.totalorder %s64, %s78
      %p80 = scmp.eq.s32.totalorder %s21, 0
      %p81 = por %p79, %p80
      %s83 = sadd.s32 %s82, 1
      %p86 = scmp.eq.s32.totalorder %s15, 1
      %p87 = scmp.ne.s32.totalorder %s82, %s84
      %p88 = scmp.eq.s32.totalorder %s15, 0
      %p89 = por %p87, %p88
      %p90 = scmp.ne.s32.totalorder %s82, %s84
      %p91 = scmp.eq.s32.totalorder %s20, 1
      %p92 = por %p90, %p91
      %p93 = scmp.ne.s32.totalorder %s84, %s85
      %p94 = scmp.eq.s32.totalorder %s20, 0
      %p95 = por %p93, %p94
      %p96 = scmp.ne.s32.totalorder %s84, %s85
      %p97 = scmp.eq.s32.totalorder %s21, 1
      %p98 = por %p96, %p97
      %p100 = scmp.ne.s32.totalorder %s85, %s99
      %p101 = scmp.eq.s32.totalorder %s21, 0
      %p102 = por %p100, %p101
      %s103 = ssub.s32 %s22, %s34
      %s104 = ssub.s32 %s23, %s30
      %s105 = sor.u32 %s103, %s104
      %p106 = scmp.eq.s32.totalorder %s105, 0
      %s108 = sadd.s32 %s107, 1
      %s109 = scalar_select %p106, %s107, %s108
      %p112 = pneg %p106
      %p113 = scmp.eq.s32.totalorder %s15, 1
      %p114 = por %p112, %p113
      %p115 = scmp.ne.s32.totalorder %s107, %s110
      %p116 = scmp.eq.s32.totalorder %s15, 0
      %p117 = por %p115, %p116
      %p118 = scmp.ne.s32.totalorder %s107, %s110
      %p119 = scmp.eq.s32.totalorder %s20, 1
      %p120 = por %p118, %p119
      %p121 = scmp.ne.s32.totalorder %s110, %s111
      %p122 = scmp.eq.s32.totalorder %s20, 0
      %p123 = por %p121, %p122
      %p124 = scmp.ne.s32.totalorder %s110, %s111
      %p125 = scmp.eq.s32.totalorder %s21, 1
      %p126 = por %p124, %p125
      %p128 = scmp.ne.s32.totalorder %s111, %s127
      %p129 = scmp.eq.s32.totalorder %s21, 0
      %p130 = por %p128, %p129
      %p131 = scmp.le.s32.totalorder 1, %s15
      %p132 = scmp.lt.s32.totalorder %s15, 3
      %p133 = pnand %p131, %p132
      %p134 = pneg %p133
      // Predicated region
      $region9: #{tpu_custom_call.1} parent=5 // pred_check
        _
      $region10: #{tpu_custom_call.1} parent=5 // pred_check_branch
        %136 = sbr.rel (%p133) target = $region12
      $region11: #{tpu_custom_call.1} parent=5 // pred_region
        %s137 = ssub.s32 %s15, 1
        // Predicated region
        $region13: #{tpu_custom_call.1} parent=11 // pred_check
          %p138 = pneg %p74
        $region14: #{tpu_custom_call.1} parent=11 // pred_check_branch
          %140 = sbr.rel (%p138) target = $region16
        $region15: #{tpu_custom_call.1} parent=11 // pred_region
          _
        $region16: #{tpu_custom_call.1} parent=11 // pred_fallthru
          _
        // Predicated region
        $region17: #{tpu_custom_call.1} parent=11 // pred_check
          %p141 = pneg %p95
        $region18: #{tpu_custom_call.1} parent=11 // pred_check_branch
          %143 = sbr.rel (%p141) target = $region20
        $region19: #{tpu_custom_call.1} parent=11 // pred_region
          _
        $region20: #{tpu_custom_call.1} parent=11 // pred_fallthru
          _
      $region12: #{tpu_custom_call.1} parent=5 // pred_fallthru
        _
      %p144 = scmp.lt.s32.totalorder %s15, 2
      // Predicated region
      $region21: #{tpu_custom_call.1} parent=5 // pred_check
        %p145 = pneg %p144
      $region22: #{tpu_custom_call.1} parent=5 // pred_check_branch
        %147 = sbr.rel (%p145) target = $region24
      $region23: #{tpu_custom_call.1} parent=5 // pred_region
        // Predicated region
        $region25: #{tpu_custom_call.1} parent=23 // pred_check
          %p148 = pneg %p47
        $region26: #{tpu_custom_call.1} parent=23 // pred_check_branch
          %150 = sbr.rel (%p148) target = $region28
        $region27: #{tpu_custom_call.1} parent=23 // pred_region
          %s151 = sand.u32 %s37, 1
          %s152 = scalar_lea.sflag [#allocation3], %s151
          %s153 = sand.u32 %s37, 1
          %s154 = smul.addr %s153, 128
          %s155 = scalar_lea.vmem [#allocation2], %s154
          %s157 = ssub.s32 2048, 2048
          %158 = vsyncadd %s152, %s157
          %s159 = smul.addr %s22, 32
          %s160 = smul.addr %s159, 64
          %s161 = scalar_lea.hbm %s0, %s160
          %s162 = sshll.u32 %s155, 4
          %s163 = int_to_ptr.vmem [resolvable:$true] %s162
          %168 = dma.hbm_to_vmem [thread:$0]  %s161, 2048, %s163, %s152, 64, 64, 4
        $region28: #{tpu_custom_call.1} parent=23 // pred_fallthru
          _
      $region24: #{tpu_custom_call.1} parent=5 // pred_fallthru
        _
      %p169 = scmp.le.s32.totalorder 1, %s15
      %p170 = scmp.lt.s32.totalorder %s15, 3
      %p171 = pnand %p169, %p170
      %p172 = pneg %p171
      // Predicated region
      $region29: #{tpu_custom_call.1} parent=5 // pred_check
        _
      $region30: #{tpu_custom_call.1} parent=5 // pred_check_branch
        %174 = sbr.rel (%p171) target = $region32
      $region31: #{tpu_custom_call.1} parent=5 // pred_region
        %s175 = ssub.s32 %s15, 1
        %s176 = sand.u32 %s40, 1
        %s177 = scalar_lea.sflag [#allocation3], %s176
        %s178 = sand.u32 %s40, 1
        %s179 = smul.addr %s178, 128
        %s180 = scalar_lea.vmem [#allocation2], %s179
        // Predicated region
        $region33: #{tpu_custom_call.1} parent=31 // pred_check
          %p181 = pneg %p53
        $region34: #{tpu_custom_call.1} parent=31 // pred_check_branch
          %183 = sbr.rel (%p181) target = $region36
        $region35: #{tpu_custom_call.1} parent=31 // pred_region
          %184 = dma.done %s177, 2048
        $region36: #{tpu_custom_call.1} parent=31 // pred_fallthru
          _
        %s185 = sand.u32 %s40, 1
        %s186 = scalar_lea.sflag [#allocation3], %s185
        %s187 = sand.u32 %s40, 1
        %s188 = smul.addr %s187, 128
        %s189 = scalar_lea.vmem [#allocation2], %s188
        %p190 = pneg %p53
        %p191 = pneg %p50
        %p192 = pneg %p74
        %p193 = pneg %p71
        %p194 = pneg %p95
        %p195 = pneg %p92
        %p196 = pneg %p123
        %p197 = pneg %p120
        %s198 = sand.u32 %s110, 1
        %s199 = scalar_lea.sflag [#allocation4], %s198
        %s200 = sand.u32 %s110, 1
        %s201 = smul.addr %s200, 128
        %s202 = scalar_lea.vmem [#allocation5], %s201
        %s203 = smul.u32 16, %s25
        %s205 = smul.u32 %s25, 16
        %v206 = vld [vmem:[%s2] sm:$0x1]
        %s207 = smul.u32 %s205, 2
        %s208 = smul.addr %s207, 4
        %s209 = scalar_lea.vmem %s180, %s208 [#allocation2]
        %v210 = vld [vmem:[%s209] sm:$0xf]
        %v211 = vld [vmem:[%s209 + $0x4] sm:$0xf]
        %v212 = vld [vmem:[%s209 + $0x8] sm:$0xf]
        %v213 = vld [vmem:[%s209 + $0xc] sm:$0xf]
        %v214 = vld [vmem:[%s209 + $0x10] sm:$0xf]
        %v215 = vld [vmem:[%s209 + $0x14] sm:$0xf]
        %v216 = vld [vmem:[%s209 + $0x18] sm:$0xf]
        %v217 = vld [vmem:[%s209 + $0x1c] sm:$0xf]
        %v218 = vld [vmem:[%s209 + $0x20] sm:$0xf]
        %v219 = vld [vmem:[%s209 + $0x24] sm:$0xf]
        %v220 = vld [vmem:[%s209 + $0x28] sm:$0xf]
        %v221 = vld [vmem:[%s209 + $0x2c] sm:$0xf]
        %v222 = vld [vmem:[%s209 + $0x30] sm:$0xf]
        %v223 = vld [vmem:[%s209 + $0x34] sm:$0xf]
        %v224 = vld [vmem:[%s209 + $0x38] sm:$0xf]
        %v225 = vld [vmem:[%s209 + $0x3c] sm:$0xf]
        %v226 = vld [vmem:[%s209 + $0x40] sm:$0xf]
        %v227 = vld [vmem:[%s209 + $0x44] sm:$0xf]
        %v228 = vld [vmem:[%s209 + $0x48] sm:$0xf]
        %v229 = vld [vmem:[%s209 + $0x4c] sm:$0xf]
        %v230 = vld [vmem:[%s209 + $0x50] sm:$0xf]
        %v231 = vld [vmem:[%s209 + $0x54] sm:$0xf]
        %v232 = vld [vmem:[%s209 + $0x58] sm:$0xf]
        %v233 = vld [vmem:[%s209 + $0x5c] sm:$0xf]
        %v234 = vld [vmem:[%s209 + $0x60] sm:$0xf]
        %v235 = vld [vmem:[%s209 + $0x64] sm:$0xf]
        %v236 = vld [vmem:[%s209 + $0x68] sm:$0xf]
        %v237 = vld [vmem:[%s209 + $0x6c] sm:$0xf]
        %v238 = vld [vmem:[%s209 + $0x70] sm:$0xf]
        %v239 = vld [vmem:[%s209 + $0x74] sm:$0xf]
        %v240 = vld [vmem:[%s209 + $0x78] sm:$0xf]
        %v241 = vld [vmem:[%s209 + $0x7c] sm:$0xf]
        %v242 = vld [vmem:[%s1] sm:$0xf]
        %v243 = vld [vmem:[%s1 + $0x4] sm:$0xf]
        %v244 = vld [vmem:[%s1 + $0x8] sm:$0xf]
        %v245 = vld [vmem:[%s1 + $0xc] sm:$0xf]
        %v246 = vld [vmem:[%s1 + $0x10] sm:$0xf]
        %v247 = vld [vmem:[%s1 + $0x14] sm:$0xf]
        %v248 = vld [vmem:[%s1 + $0x18] sm:$0xf]
        %v249 = vld [vmem:[%s1 + $0x1c] sm:$0xf]
        %v250 = vld [vmem:[%s1 + $0x20] sm:$0xf]
        %v251 = vld [vmem:[%s1 + $0x24] sm:$0xf]
        %v252 = vld [vmem:[%s1 + $0x28] sm:$0xf]
        %v253 = vld [vmem:[%s1 + $0x2c] sm:$0xf]
        %v255 = vlaneseq
        %v256 = vshrl.u32 %v255, 7
        %v257 = vsub.s32 0, %v256
        %v258 = vrot.slane %v206, %v257
        %v292 = vunpack.c.l.b16 %v210
        %v293 = vunpack.c.l.b16 %v211
        %v294 = vunpack.c.l.b16 %v212
        %v295 = vunpack.c.l.b16 %v213
        %v296 = vunpack.c.l.b16 %v214
        %v297 = vunpack.c.l.b16 %v215
        %v298 = vunpack.c.l.b16 %v216
        %v299 = vunpack.c.l.b16 %v217
        %v300 = vunpack.c.l.b16 %v218
        %v301 = vunpack.c.l.b16 %v219
        %v302 = vunpack.c.l.b16 %v220
        %v303 = vunpack.c.l.b16 %v221
        %v304 = vunpack.c.l.b16 %v222
        %v305 = vunpack.c.l.b16 %v223
        %v306 = vunpack.c.l.b16 %v224
        %v307 = vunpack.c.l.b16 %v225
        %v308 = vunpack.c.l.b16 %v226
        %v309 = vunpack.c.l.b16 %v227
        %v310 = vunpack.c.l.b16 %v228
        %v311 = vunpack.c.l.b16 %v229
        %v312 = vunpack.c.l.b16 %v230
        %v313 = vunpack.c.l.b16 %v231
        %v314 = vunpack.c.l.b16 %v232
        %v315 = vunpack.c.l.b16 %v233
        %v316 = vunpack.c.l.b16 %v234
        %v317 = vunpack.c.l.b16 %v235
        %v318 = vunpack.c.l.b16 %v236
        %v319 = vunpack.c.l.b16 %v237
        %v320 = vunpack.c.l.b16 %v238
        %v321 = vunpack.c.l.b16 %v239
        %v322 = vunpack.c.l.b16 %v240
        %v323 = vunpack.c.l.b16 %v241
        %v324 = vpack.c.b16 %v293, %v292
        %v325 = vpack.c.b16 %v295, %v294
        %v326 = vpack.c.b16 %v297, %v296
        %v327 = vpack.c.b16 %v299, %v298
        %v328 = vpack.c.b16 %v301, %v300
        %v329 = vpack.c.b16 %v303, %v302
        %v330 = vpack.c.b16 %v305, %v304
        %v331 = vpack.c.b16 %v307, %v306
        %v332 = vpack.c.b16 %v309, %v308
        %v333 = vpack.c.b16 %v311, %v310
        %v334 = vpack.c.b16 %v313, %v312
        %v335 = vpack.c.b16 %v315, %v314
        %v336 = vpack.c.b16 %v317, %v316
        %v337 = vpack.c.b16 %v319, %v318
        %v338 = vpack.c.b16 %v321, %v320
        %v339 = vpack.c.b16 %v323, %v322
        %v352 = vunpack.c.l.b16 %v242
        %v353 = vunpack.c.l.b16 %v243
        %v354 = vunpack.c.l.b16 %v244
        %v355 = vunpack.c.l.b16 %v245
        %v356 = vunpack.c.l.b16 %v246
        %v357 = vunpack.c.l.b16 %v247
        %v358 = vunpack.c.l.b16 %v248
        %v359 = vunpack.c.l.b16 %v249
        %v360 = vunpack.c.l.b16 %v250
        %v361 = vunpack.c.l.b16 %v251
        %v362 = vunpack.c.l.b16 %v252
        %v363 = vunpack.c.l.b16 %v253
        %v364 = vpack.c.b16 %v353, %v352
        %v365 = vpack.c.b16 %v355, %v354
        %v366 = vpack.c.b16 %v357, %v356
        %v367 = vpack.c.b16 %v359, %v358
        %v368 = vpack.c.b16 %v361, %v360
        %v369 = vpack.c.b16 %v363, %v362
        %vm376 = vcmask 785408
        %v378 = vsel %vm376, %v324, 0
        %v381 = vsel %vm376, %v325, 0
        %v384 = vsel %vm376, %v326, 0
        %v387 = vsel %vm376, %v327, 0
        %v390 = vsel %vm376, %v328, 0
        %v393 = vsel %vm376, %v329, 0
        %v396 = vsel %vm376, %v330, 0
        %v399 = vsel %vm376, %v331, 0
        %v402 = vsel %vm376, %v332, 0
        %v405 = vsel %vm376, %v333, 0
        %v408 = vsel %vm376, %v334, 0
        %v411 = vsel %vm376, %v335, 0
        %v414 = vsel %vm376, %v336, 0
        %v417 = vsel %vm376, %v337, 0
        %v420 = vsel %vm376, %v338, 0
        %v423 = vsel %vm376, %v339, 0
        %425 = vmatprep.subr.bf16.mxu0 0
        %426 = vmatpush1.bf16.msra.mxu0 %v364
        %427 = vmatprep.subr.bf16.mxu0 0
        %428 = vmatpush1.bf16.msra.mxu0 %v365
        %429 = vmatprep.subr.bf16.mxu0 0
        %430 = vmatpush1.bf16.msra.mxu0 %v366
        %431 = vmatprep.subr.bf16.mxu0 0
        %432 = vmatpush1.bf16.msra.mxu0 %v367
        %433 = vmatprep.subr.bf16.mxu0 0
        %434 = vmatpush1.bf16.msra.mxu0 %v368
        %435 = vmatprep.subr.bf16.mxu0 0
        %436 = vmatpush1.bf16.msra.mxu0 %v369
        %437 = vmatprep.subr.bf16.mxu0 0
        %438 = vmatpush1.bf16.msra.mxu0 0
        %439 = vmatprep.subr.bf16.mxu0 0
        %440 = vmatpush1.bf16.msra.mxu0 0
        %441 = vmatprep.subr.bf16.mxu0 0
        %442 = vmatpush1.bf16.msra.mxu0 0
        %443 = vmatprep.subr.bf16.mxu0 0
        %444 = vmatpush1.bf16.msra.mxu0 0
        %445 = vmatprep.subr.bf16.mxu0 0
        %446 = vmatpush1.bf16.msra.mxu0 0
        %447 = vmatprep.subr.bf16.mxu0 0
        %448 = vmatpush1.bf16.msra.mxu0 0
        %449 = vmatprep.subr.bf16.mxu0 0
        %450 = vmatpush1.bf16.msra.mxu0 0
        %451 = vmatprep.subr.bf16.mxu0 0
        %452 = vmatpush1.bf16.msra.mxu0 0
        %453 = vmatprep.subr.bf16.mxu0 0
        %454 = vmatpush1.bf16.msra.mxu0 0
        %455 = vmatprep.subr.bf16.mxu0 0
        %456 = vmatpush1.bf16.msra.mxu0 0
        %457 = vmatprep.mubr.bf16.mxu0 0
        %458 = vmatmul.mubr.bf16.gmra.mrb[0].mxu0 %v378
        %v459 = vpop.f32.mrb[0].mxu0
        %v460 = vadd.f32 %v258, %v459
        %v461 = vpop.f32.mrb[0].mxu0
        %v462 = vpop.f32.mrb[0].mxu0
        %v463 = vadd.f32 %v258, %v462
        %v464 = vpop.f32.mrb[0].mxu0
        %465 = vmatprep.mubr.bf16.mxu0 0
        %466 = vmatmul.mubr.bf16.gmra.mrb[0].mxu0 %v381
        %v467 = vpop.f32.mrb[0].mxu0
        %v468 = vadd.f32 %v258, %v467
        %v469 = vpop.f32.mrb[0].mxu0
        %v470 = vpop.f32.mrb[0].mxu0
        %v471 = vadd.f32 %v258, %v470
        %v472 = vpop.f32.mrb[0].mxu0
        %473 = vmatprep.mubr.bf16.mxu0 0
        %474 = vmatmul.mubr.bf16.gmra.mrb[0].mxu0 %v384
        %v475 = vpop.f32.mrb[0].mxu0
        %v476 = vadd.f32 %v258, %v475
        %v477 = vpop.f32.mrb[0].mxu0
        %v478 = vpop.f32.mrb[0].mxu0
        %v479 = vadd.f32 %v258, %v478
        %v480 = vpop.f32.mrb[0].mxu0
        %481 = vmatprep.mubr.bf16.mxu0 0
        %482 = vmatmul.mubr.bf16.gmra.mrb[0].mxu0 %v387
        %v483 = vpop.f32.mrb[0].mxu0
        %v484 = vadd.f32 %v258, %v483
        %v485 = vpop.f32.mrb[0].mxu0
        %v486 = vpop.f32.mrb[0].mxu0
        %v487 = vadd.f32 %v258, %v486
        %v488 = vpop.f32.mrb[0].mxu0
        %489 = vmatprep.mubr.bf16.mxu0 0
        %490 = vmatmul.mubr.bf16.gmra.mrb[0].mxu0 %v390
        %v491 = vpop.f32.mrb[0].mxu0
        %v492 = vadd.f32 %v258, %v491
        %v493 = vpop.f32.mrb[0].mxu0
        %v494 = vpop.f32.mrb[0].mxu0
        %v495 = vadd.f32 %v258, %v494
        %v496 = vpop.f32.mrb[0].mxu0
        %497 = vmatprep.mubr.bf16.mxu0 0
        %498 = vmatmul.mubr.bf16.gmra.mrb[0].mxu0 %v393
        %v499 = vpop.f32.mrb[0].mxu0
        %v500 = vadd.f32 %v258, %v499
        %v501 = vpop.f32.mrb[0].mxu0
        %v502 = vpop.f32.mrb[0].mxu0
        %v503 = vadd.f32 %v258, %v502
        %v504 = vpop.f32.mrb[0].mxu0
        %505 = vmatprep.mubr.bf16.mxu0 0
        %506 = vmatmul.mubr.bf16.gmra.mrb[0].mxu0 %v396
        %v507 = vpop.f32.mrb[0].mxu0
        %v508 = vadd.f32 %v258, %v507
        %v509 = vpop.f32.mrb[0].mxu0
        %v510 = vpop.f32.mrb[0].mxu0
        %v511 = vadd.f32 %v258, %v510
        %v512 = vpop.f32.mrb[0].mxu0
        %513 = vmatprep.mubr.bf16.mxu0 0
        %514 = vmatmul.mubr.bf16.gmra.mrb[0].mxu0 %v399
        %v515 = vpop.f32.mrb[0].mxu0
        %v516 = vadd.f32 %v258, %v515
        %v517 = vpop.f32.mrb[0].mxu0
        %v518 = vpop.f32.mrb[0].mxu0
        %v519 = vadd.f32 %v258, %v518
        %v520 = vpop.f32.mrb[0].mxu0
        %521 = vmatprep.mubr.bf16.mxu0 0
        %522 = vmatmul.mubr.bf16.gmra.mrb[0].mxu0 %v402
        %v523 = vpop.f32.mrb[0].mxu0
        %v524 = vadd.f32 %v258, %v523
        %v525 = vpop.f32.mrb[0].mxu0
        %v526 = vpop.f32.mrb[0].mxu0
        %v527 = vadd.f32 %v258, %v526
        %v528 = vpop.f32.mrb[0].mxu0
        %529 = vmatprep.mubr.bf16.mxu0 0
        %530 = vmatmul.mubr.bf16.gmra.mrb[0].mxu0 %v405
        %v531 = vpop.f32.mrb[0].mxu0
        %v532 = vadd.f32 %v258, %v531
        %v533 = vpop.f32.mrb[0].mxu0
        %v534 = vpop.f32.mrb[0].mxu0
        %v535 = vadd.f32 %v258, %v534
        %v536 = vpop.f32.mrb[0].mxu0
        %537 = vmatprep.mubr.bf16.mxu0 0
        %538 = vmatmul.mubr.bf16.gmra.mrb[0].mxu0 %v408
        %v539 = vpop.f32.mrb[0].mxu0
        %v540 = vadd.f32 %v258, %v539
        %v541 = vpop.f32.mrb[0].mxu0
        %v542 = vpop.f32.mrb[0].mxu0
        %v543 = vadd.f32 %v258, %v542
        %v544 = vpop.f32.mrb[0].mxu0
        %545 = vmatprep.mubr.bf16.mxu0 0
        %546 = vmatmul.mubr.bf16.gmra.mrb[0].mxu0 %v411
        %v547 = vpop.f32.mrb[0].mxu0
        %v548 = vadd.f32 %v258, %v547
        %v549 = vpop.f32.mrb[0].mxu0
        %v550 = vpop.f32.mrb[0].mxu0
        %v551 = vadd.f32 %v258, %v550
        %v552 = vpop.f32.mrb[0].mxu0
        %553 = vmatprep.mubr.bf16.mxu0 0
        %554 = vmatmul.mubr.bf16.gmra.mrb[0].mxu0 %v414
        %v555 = vpop.f32.mrb[0].mxu0
        %v556 = vadd.f32 %v258, %v555
        %v557 = vpop.f32.mrb[0].mxu0
        %v558 = vpop.f32.mrb[0].mxu0
        %v559 = vadd.f32 %v258, %v558
        %v560 = vpop.f32.mrb[0].mxu0
        %561 = vmatprep.mubr.bf16.mxu0 0
        %562 = vmatmul.mubr.bf16.gmra.mrb[0].mxu0 %v417
        %v563 = vpop.f32.mrb[0].mxu0
        %v564 = vadd.f32 %v258, %v563
        %v565 = vpop.f32.mrb[0].mxu0
        %v566 = vpop.f32.mrb[0].mxu0
        %v567 = vadd.f32 %v258, %v566
        %v568 = vpop.f32.mrb[0].mxu0
        %569 = vmatprep.mubr.bf16.mxu0 0
        %570 = vmatmul.mubr.bf16.gmra.mrb[0].mxu0 %v420
        %v571 = vpop.f32.mrb[0].mxu0
        %v572 = vadd.f32 %v258, %v571
        %v573 = vpop.f32.mrb[0].mxu0
        %v574 = vpop.f32.mrb[0].mxu0
        %v575 = vadd.f32 %v258, %v574
        %v576 = vpop.f32.mrb[0].mxu0
        %577 = vmatprep.mubr.bf16.mxu0 0
        %578 = vmatmul.mubr.bf16.gmra.mrb[0].mxu0 %v423
        %v579 = vpop.f32.mrb[0].mxu0
        %v580 = vadd.f32 %v258, %v579
        %v581 = vpop.f32.mrb[0].mxu0
        %v582 = vpop.f32.mrb[0].mxu0
        %v583 = vadd.f32 %v258, %v582
        %v584 = vpop.f32.mrb[0].mxu0
        %585 = vdwg.mxu0
        %vm586 = vcmp.ge.f32.partialorder %v460, 0.0
        %vm587 = vcmp.ge.f32.partialorder %v463, 0.0
        %vm588 = vcmp.ge.f32.partialorder %v468, 0.0
        %vm589 = vcmp.ge.f32.partialorder %v471, 0.0
        %vm590 = vcmp.ge.f32.partialorder %v476, 0.0
        %vm591 = vcmp.ge.f32.partialorder %v479, 0.0
        %vm592 = vcmp.ge.f32.partialorder %v484, 0.0
        %vm593 = vcmp.ge.f32.partialorder %v487, 0.0
        %vm594 = vcmp.ge.f32.partialorder %v492, 0.0
        %vm595 = vcmp.ge.f32.partialorder %v495, 0.0
        %vm596 = vcmp.ge.f32.partialorder %v500, 0.0
        %vm597 = vcmp.ge.f32.partialorder %v503, 0.0
        %vm598 = vcmp.ge.f32.partialorder %v508, 0.0
        %vm599 = vcmp.ge.f32.partialorder %v511, 0.0
        %vm600 = vcmp.ge.f32.partialorder %v516, 0.0
        %vm601 = vcmp.ge.f32.partialorder %v519, 0.0
        %vm602 = vcmp.ge.f32.partialorder %v524, 0.0
        %vm603 = vcmp.ge.f32.partialorder %v527, 0.0
        %vm604 = vcmp.ge.f32.partialorder %v532, 0.0
        %vm605 = vcmp.ge.f32.partialorder %v535, 0.0
        %vm606 = vcmp.ge.f32.partialorder %v540, 0.0
        %vm607 = vcmp.ge.f32.partialorder %v543, 0.0
        %vm608 = vcmp.ge.f32.partialorder %v548, 0.0
        %vm609 = vcmp.ge.f32.partialorder %v551, 0.0
        %vm610 = vcmp.ge.f32.partialorder %v556, 0.0
        %vm611 = vcmp.ge.f32.partialorder %v559, 0.0
        %vm612 = vcmp.ge.f32.partialorder %v564, 0.0
        %vm613 = vcmp.ge.f32.partialorder %v567, 0.0
        %vm614 = vcmp.ge.f32.partialorder %v572, 0.0
        %vm615 = vcmp.ge.f32.partialorder %v575, 0.0
        %vm616 = vcmp.ge.f32.partialorder %v580, 0.0
        %vm617 = vcmp.ge.f32.partialorder %v583, 0.0
        %v618 = vmul.f32 %v460, 0.2
        %v619 = vmul.f32 %v463, 0.2
        %v620 = vmul.f32 %v468, 0.2
        %v621 = vmul.f32 %v471, 0.2
        %v622 = vmul.f32 %v476, 0.2
        %v623 = vmul.f32 %v479, 0.2
        %v624 = vmul.f32 %v484, 0.2
        %v625 = vmul.f32 %v487, 0.2
        %v626 = vmul.f32 %v492, 0.2
        %v627 = vmul.f32 %v495, 0.2
        %v628 = vmul.f32 %v500, 0.2
        %v629 = vmul.f32 %v503, 0.2
        %v630 = vmul.f32 %v508, 0.2
        %v631 = vmul.f32 %v511, 0.2
        %v632 = vmul.f32 %v516, 0.2
        %v633 = vmul.f32 %v519, 0.2
        %v634 = vmul.f32 %v524, 0.2
        %v635 = vmul.f32 %v527, 0.2
        %v636 = vmul.f32 %v532, 0.2
        %v637 = vmul.f32 %v535, 0.2
        %v638 = vmul.f32 %v540, 0.2
        %v639 = vmul.f32 %v543, 0.2
        %v640 = vmul.f32 %v548, 0.2
        %v641 = vmul.f32 %v551, 0.2
        %v642 = vmul.f32 %v556, 0.2
        %v643 = vmul.f32 %v559, 0.2
        %v644 = vmul.f32 %v564, 0.2
        %v645 = vmul.f32 %v567, 0.2
        %v646 = vmul.f32 %v572, 0.2
        %v647 = vmul.f32 %v575, 0.2
        %v648 = vmul.f32 %v580, 0.2
        %v649 = vmul.f32 %v583, 0.2
        %v650 = vsel %vm586, %v460, %v618
        %v651 = vsel %vm587, %v463, %v619
        %v652 = vsel %vm588, %v468, %v620
        %v653 = vsel %vm589, %v471, %v621
        %v654 = vsel %vm590, %v476, %v622
        %v655 = vsel %vm591, %v479, %v623
        %v656 = vsel %vm592, %v484, %v624
        %v657 = vsel %vm593, %v487, %v625
        %v658 = vsel %vm594, %v492, %v626
        %v659 = vsel %vm595, %v495, %v627
        %v660 = vsel %vm596, %v500, %v628
        %v661 = vsel %vm597, %v503, %v629
        %v662 = vsel %vm598, %v508, %v630
        %v663 = vsel %vm599, %v511, %v631
        %v664 = vsel %vm600, %v516, %v632
        %v665 = vsel %vm601, %v519, %v633
        %v666 = vsel %vm602, %v524, %v634
        %v667 = vsel %vm603, %v527, %v635
        %v668 = vsel %vm604, %v532, %v636
        %v669 = vsel %vm605, %v535, %v637
        %v670 = vsel %vm606, %v540, %v638
        %v671 = vsel %vm607, %v543, %v639
        %v672 = vsel %vm608, %v548, %v640
        %v673 = vsel %vm609, %v551, %v641
        %v674 = vsel %vm610, %v556, %v642
        %v675 = vsel %vm611, %v559, %v643
        %v676 = vsel %vm612, %v564, %v644
        %v677 = vsel %vm613, %v567, %v645
        %v678 = vsel %vm614, %v572, %v646
        %v679 = vsel %vm615, %v575, %v647
        %v680 = vsel %vm616, %v580, %v648
        %v681 = vsel %vm617, %v583, %v649
        %v682 = vpack.c.bf16 %v651, %v650
        %v683 = vpack.c.bf16 %v653, %v652
        %v684 = vpack.c.bf16 %v655, %v654
        %v685 = vpack.c.bf16 %v657, %v656
        %v686 = vpack.c.bf16 %v659, %v658
        %v687 = vpack.c.bf16 %v661, %v660
        %v688 = vpack.c.bf16 %v663, %v662
        %v689 = vpack.c.bf16 %v665, %v664
        %v690 = vpack.c.bf16 %v667, %v666
        %v691 = vpack.c.bf16 %v669, %v668
        %v692 = vpack.c.bf16 %v671, %v670
        %v693 = vpack.c.bf16 %v673, %v672
        %v694 = vpack.c.bf16 %v675, %v674
        %v695 = vpack.c.bf16 %v677, %v676
        %v696 = vpack.c.bf16 %v679, %v678
        %v697 = vpack.c.bf16 %v681, %v680
        %v714 = vunpack.c.l.b16 %v682
        %v715 = vunpack.c.h.b16 %v682
        %v716 = vunpack.c.l.b16 %v683
        %v717 = vunpack.c.h.b16 %v683
        %v718 = vunpack.c.l.b16 %v684
        %v719 = vunpack.c.h.b16 %v684
        %v720 = vunpack.c.l.b16 %v685
        %v721 = vunpack.c.h.b16 %v685
        %v722 = vunpack.c.l.b16 %v686
        %v723 = vunpack.c.h.b16 %v686
        %v724 = vunpack.c.l.b16 %v687
        %v725 = vunpack.c.h.b16 %v687
        %v726 = vunpack.c.l.b16 %v688
        %v727 = vunpack.c.h.b16 %v688
        %v728 = vunpack.c.l.b16 %v689
        %v729 = vunpack.c.h.b16 %v689
        %v730 = vunpack.c.l.b16 %v690
        %v731 = vunpack.c.h.b16 %v690
        %v732 = vunpack.c.l.b16 %v691
        %v733 = vunpack.c.h.b16 %v691
        %v734 = vunpack.c.l.b16 %v692
        %v735 = vunpack.c.h.b16 %v692
        %v736 = vunpack.c.l.b16 %v693
        %v737 = vunpack.c.h.b16 %v693
        %v738 = vunpack.c.l.b16 %v694
        %v739 = vunpack.c.h.b16 %v694
        %v740 = vunpack.c.l.b16 %v695
        %v741 = vunpack.c.h.b16 %v695
        %v742 = vunpack.c.l.b16 %v696
        %v743 = vunpack.c.h.b16 %v696
        %v744 = vunpack.c.l.b16 %v697
        %v745 = vunpack.c.h.b16 %v697
        %v746 = vpack.c.b16 %v714, %v714
        %v747 = vpack.c.b16 %v715, %v715
        %v748 = vpack.c.b16 %v716, %v716
        %v749 = vpack.c.b16 %v717, %v717
        %v750 = vpack.c.b16 %v718, %v718
        %v751 = vpack.c.b16 %v719, %v719
        %v752 = vpack.c.b16 %v720, %v720
        %v753 = vpack.c.b16 %v721, %v721
        %v754 = vpack.c.b16 %v722, %v722
        %v755 = vpack.c.b16 %v723, %v723
        %v756 = vpack.c.b16 %v724, %v724
        %v757 = vpack.c.b16 %v725, %v725
        %v758 = vpack.c.b16 %v726, %v726
        %v759 = vpack.c.b16 %v727, %v727
        %v760 = vpack.c.b16 %v728, %v728
        %v761 = vpack.c.b16 %v729, %v729
        %v762 = vpack.c.b16 %v730, %v730
        %v763 = vpack.c.b16 %v731, %v731
        %v764 = vpack.c.b16 %v732, %v732
        %v765 = vpack.c.b16 %v733, %v733
        %v766 = vpack.c.b16 %v734, %v734
        %v767 = vpack.c.b16 %v735, %v735
        %v768 = vpack.c.b16 %v736, %v736
        %v769 = vpack.c.b16 %v737, %v737
        %v770 = vpack.c.b16 %v738, %v738
        %v771 = vpack.c.b16 %v739, %v739
        %v772 = vpack.c.b16 %v740, %v740
        %v773 = vpack.c.b16 %v741, %v741
        %v774 = vpack.c.b16 %v742, %v742
        %v775 = vpack.c.b16 %v743, %v743
        %v776 = vpack.c.b16 %v744, %v744
        %v777 = vpack.c.b16 %v745, %v745
        %vm810 = vcmask 257024
        %811 = vst.msk [vmem:[%s202] sm:$0xf] %vm810, %v746
        %812 = vst.msk [vmem:[%s202 + $0x4] sm:$0xf] %vm810, %v747
        %813 = vst.msk [vmem:[%s202 + $0x8] sm:$0xf] %vm810, %v748
        %814 = vst.msk [vmem:[%s202 + $0xc] sm:$0xf] %vm810, %v749
        %815 = vst.msk [vmem:[%s202 + $0x10] sm:$0xf] %vm810, %v750
        %816 = vst.msk [vmem:[%s202 + $0x14] sm:$0xf] %vm810, %v751
        %817 = vst.msk [vmem:[%s202 + $0x18] sm:$0xf] %vm810, %v752
        %818 = vst.msk [vmem:[%s202 + $0x1c] sm:$0xf] %vm810, %v753
        %819 = vst.msk [vmem:[%s202 + $0x20] sm:$0xf] %vm810, %v754
        %820 = vst.msk [vmem:[%s202 + $0x24] sm:$0xf] %vm810, %v755
        %821 = vst.msk [vmem:[%s202 + $0x28] sm:$0xf] %vm810, %v756
        %822 = vst.msk [vmem:[%s202 + $0x2c] sm:$0xf] %vm810, %v757
        %823 = vst.msk [vmem:[%s202 + $0x30] sm:$0xf] %vm810, %v758
        %824 = vst.msk [vmem:[%s202 + $0x34] sm:$0xf] %vm810, %v759
        %825 = vst.msk [vmem:[%s202 + $0x38] sm:$0xf] %vm810, %v760
        %826 = vst.msk [vmem:[%s202 + $0x3c] sm:$0xf] %vm810, %v761
        %827 = vst.msk [vmem:[%s202 + $0x40] sm:$0xf] %vm810, %v762
        %828 = vst.msk [vmem:[%s202 + $0x44] sm:$0xf] %vm810, %v763
        %829 = vst.msk [vmem:[%s202 + $0x48] sm:$0xf] %vm810, %v764
        %830 = vst.msk [vmem:[%s202 + $0x4c] sm:$0xf] %vm810, %v765
        %831 = vst.msk [vmem:[%s202 + $0x50] sm:$0xf] %vm810, %v766
        %832 = vst.msk [vmem:[%s202 + $0x54] sm:$0xf] %vm810, %v767
        %833 = vst.msk [vmem:[%s202 + $0x58] sm:$0xf] %vm810, %v768
        %834 = vst.msk [vmem:[%s202 + $0x5c] sm:$0xf] %vm810, %v769
        %835 = vst.msk [vmem:[%s202 + $0x60] sm:$0xf] %vm810, %v770
        %836 = vst.msk [vmem:[%s202 + $0x64] sm:$0xf] %vm810, %v771
        %837 = vst.msk [vmem:[%s202 + $0x68] sm:$0xf] %vm810, %v772
        %838 = vst.msk [vmem:[%s202 + $0x6c] sm:$0xf] %vm810, %v773
        %839 = vst.msk [vmem:[%s202 + $0x70] sm:$0xf] %vm810, %v774
        %840 = vst.msk [vmem:[%s202 + $0x74] sm:$0xf] %vm810, %v775
        %841 = vst.msk [vmem:[%s202 + $0x78] sm:$0xf] %vm810, %v776
        %842 = vst.msk [vmem:[%s202 + $0x7c] sm:$0xf] %vm810, %v777
        %s843 = sand.u32 %s110, 1
        %s844 = scalar_lea.sflag [#allocation4], %s843
        %s845 = sand.u32 %s110, 1
        %s846 = smul.addr %s845, 128
        %s847 = scalar_lea.vmem [#allocation5], %s846
        // Predicated region
        $region37: #{tpu_custom_call.1} parent=31 // pred_check
          %p848 = pneg %p120
        $region38: #{tpu_custom_call.1} parent=31 // pred_check_branch
          %850 = sbr.rel (%p848) target = $region40
        $region39: #{tpu_custom_call.1} parent=31 // pred_region
          %s851 = smul.u32 16, %s25
          %s853 = ssub.s32 2048, 2048
          %854 = vsyncadd %s844, %s853
          %s855 = smul.addr %s851, 2
          %s856 = smul.addr %s24, 32
          %s857 = sadd.s32 %s855, %s856
          %s858 = smul.addr %s857, 64
          %s859 = scalar_lea.hbm %s3, %s858
          %s860 = sshll.u32 %s847, 4
          %s861 = int_to_ptr.vmem [resolvable:$true] %s860
          %866 = dma.vmem_to_hbm [thread:$0]  %s861, 2048, %s859, %s844, 64, 64, 4
        $region40: #{tpu_custom_call.1} parent=31 // pred_fallthru
          _
      $region32: #{tpu_custom_call.1} parent=5 // pred_fallthru
        _
      %p867 = scmp.le.s32.totalorder 2, %s15
      // Predicated region
      $region41: #{tpu_custom_call.1} parent=5 // pred_check
        %p868 = pneg %p867
      $region42: #{tpu_custom_call.1} parent=5 // pred_check_branch
        %870 = sbr.rel (%p868) target = $region44
      $region43: #{tpu_custom_call.1} parent=5 // pred_region
        %s871 = ssub.s32 %s15, 2
        // Predicated region
        $region45: #{tpu_custom_call.1} parent=43 // pred_check
          %p872 = pneg %p126
        $region46: #{tpu_custom_call.1} parent=43 // pred_check_branch
          %874 = sbr.rel (%p872) target = $region48
        $region47: #{tpu_custom_call.1} parent=43 // pred_region
          %s875 = sand.u32 %s111, 1
          %s876 = scalar_lea.sflag [#allocation4], %s875
          %s877 = sand.u32 %s111, 1
          %s878 = smul.addr %s877, 128
          %s879 = scalar_lea.vmem [#allocation5], %s878
          %880 = dma.done %s876, 2048
        $region48: #{tpu_custom_call.1} parent=43 // pred_fallthru
          _
      $region44: #{tpu_custom_call.1} parent=5 // pred_fallthru
        _
    $region6: #{tpu_custom_call.1} parent=1 // loop_footer
      %s19 = sadd.s32 1, %s15
    $region7: #{tpu_custom_call.1} parent=1 // loop_footer_branch
      %14 = sbr.rel target = $region3
    $region8: #{tpu_custom_call.1} parent=1 // loop_exit
      _
    %881 = vsyncpa [#allocation3], 1
    %s882 = scalar_lea.sflag [#allocation3], 1
    %883 = vsyncpa %s882, 1
    %884 = vsyncpa [#allocation4], 1
    %s885 = scalar_lea.sflag [#allocation4], 1
    %886 = vsyncpa %s885, 1

</llo_original>
